<compile_context>
chip_gen: v6e
topology: v6e:2x2x1
jax: 0.10.0
libtpu: 0.0.40
codegen_flags: <defaults>
</compile_context>

<pallas_src>
import functools

import jax
import jax.numpy as jnp
from jax.experimental import pallas as pl
from jax.experimental.pallas import tpu as pltpu

BOARD_SIZE = 3
IN_DIM = BOARD_SIZE * BOARD_SIZE     # 9
HIDDEN = 128
SUBLANE = 16                         # bf16 sublane packing granularity
LN_EPS = 1e-5                        # torch.nn.LayerNorm default eps
DEFAULT_BATCH_TILE = 1024            # rows per grid step (amortizes step overhead)

# Row indices inside the packed (8, 128) vector-parameter array.
_B1, _G1, _BE1, _B2, _G2, _BE2 = 0, 1, 2, 3, 4, 5


def _round_up(n, m):
    return ((n + m - 1) // m) * m


def _layernorm(h, gamma, beta):
    # Fused statistics in one pass over the lane axis: var = E[h^2] - mu^2.
    # Kept in f32 (128 features, bias-scale activations -> no cancellation risk).
    inv_n = 1.0 / h.shape[-1]
    mu = jnp.sum(h, axis=-1, keepdims=True) * inv_n
    ms = jnp.sum(h * h, axis=-1, keepdims=True) * inv_n
    var = ms - mu * mu
    inv = jax.lax.rsqrt(var + LN_EPS)
    return (h - mu) * inv * gamma + beta


def tictactoe_kernel(x_ref, w1_ref, w2_ref, w3_ref, vp_ref, b3_ref, o_ref):
    vp = vp_ref[...]                                   # (8, 128) resident f32
    b1, g1, be1 = vp[_B1:_B1 + 1], vp[_G1:_G1 + 1], vp[_BE1:_BE1 + 1]
    b2, g2, be2 = vp[_B2:_B2 + 1], vp[_G2:_G2 + 1], vp[_BE2:_BE2 + 1]

    # fc1 -> ln1 -> relu   (bf16 MXU inputs, f32 accumulate)
    h = jnp.dot(x_ref[...], w1_ref[...],
                preferred_element_type=jnp.float32) + b1
    h = _layernorm(h, g1, be1)
    h = jnp.maximum(h, 0.0)
    # TODO(synk): nn.Dropout(0.3) is identity in eval mode; training-mode
    # stochastic masking is not implemented here.

    # fc2 -> ln2 -> relu
    h = jnp.dot(h.astype(jnp.bfloat16), w2_ref[...],
                preferred_element_type=jnp.float32) + b2
    h = _layernorm(h, g2, be2)
    h = jnp.maximum(h, 0.0)

    # fc3: narrow (bt, 9) f32 output, written unpadded to HBM.
    o_ref[...] = jnp.dot(h.astype(jnp.bfloat16), w3_ref[...],
                         preferred_element_type=jnp.float32) + b3_ref[...]


def pack_params(params):
    """Cast matmul weights to bf16 at their natural (unpadded) shapes and pack
    the six (1,128) vector params into one resident (8,128) f32 array.
    Returns a tuple in kernel argument order: (w1, w2, w3, vec, b3)."""
    bf16, f32 = jnp.bfloat16, jnp.float32
    w1 = params["w1"].astype(bf16)                    # (9, 128)
    w2 = params["w2"].astype(bf16)                    # (128, 128)
    w3 = params["w3"].astype(bf16)                    # (128, 9)
    vec = jnp.zeros((8, HIDDEN), f32)
    vec = vec.at[_B1].set(params["b1"].reshape(HIDDEN).astype(f32))
    vec = vec.at[_G1].set(params["g1"].reshape(HIDDEN).astype(f32))
    vec = vec.at[_BE1].set(params["be1"].reshape(HIDDEN).astype(f32))
    vec = vec.at[_B2].set(params["b2"].reshape(HIDDEN).astype(f32))
    vec = vec.at[_G2].set(params["g2"].reshape(HIDDEN).astype(f32))
    vec = vec.at[_BE2].set(params["be2"].reshape(HIDDEN).astype(f32))
    b3 = params["b3"].reshape(1, IN_DIM).astype(f32)  # (1, 9)
    return (w1, w2, w3, vec, b3)


@functools.partial(jax.jit, static_argnames=("batch_tile",))
def tictactoe_net_forward(x, packed_params, *, batch_tile=DEFAULT_BATCH_TILE):
    """x: any shape reshapable to (B, 9). Returns (B, 9) float32 logits."""
    x2d = jnp.reshape(x, (-1, IN_DIM))
    B = x2d.shape[0]

    # Batch tile: multiple of 16 (bf16 sublane packing), capped near B so small
    # batches do not DMA huge zero tiles. Keep >= 2 grid steps for big batches
    # so v7x's second TensorCore gets work via the "parallel" axis.
    bt = _round_up(min(batch_tile, _round_up(B, SUBLANE)), SUBLANE)
    Bp = _round_up(B, bt)
    grid = (Bp // bt,)

    # Board values are in {-1, 0, 1}: the bf16 cast is exact and halves x DMA.
    # No lane padding — x stays 9-wide in HBM (implicit lane padding only in VMEM).
    x_pad = jnp.pad(x2d.astype(jnp.bfloat16), ((0, Bp - B), (0, 0)))

    resident = lambda i: (0, 0)                       # params stay in VMEM across steps
    in_specs = [
        pl.BlockSpec((bt, IN_DIM), lambda i: (i, 0)),     # x tile (bt, 9)
        pl.BlockSpec((IN_DIM, HIDDEN), resident),         # w1 (9, 128)
        pl.BlockSpec((HIDDEN, HIDDEN), resident),         # w2 (128, 128)
        pl.BlockSpec((HIDDEN, IN_DIM), resident),         # w3 (128, 9)
        pl.BlockSpec((8, HIDDEN), resident),              # packed b1/g1/be1/b2/g2/be2
        pl.BlockSpec((1, IN_DIM), resident),              # b3 (1, 9)
    ]

    out = pl.pallas_call(
        tictactoe_kernel,
        out_shape=jax.ShapeDtypeStruct((Bp, IN_DIM), jnp.float32),
        grid=grid,
        in_specs=in_specs,
        out_specs=pl.BlockSpec((bt, IN_DIM), lambda i: (i, 0)),
        compiler_params=pltpu.CompilerParams(
            dimension_semantics=("parallel",),
        ),
    )(x_pad, *packed_params)

    return out[:B]


def init_params(key):
    """Deterministic synthetic parameters. Linear weights stored as (in, out)."""
    ks = jax.random.split(key, 6)
    scale1 = 1.0 / jnp.sqrt(IN_DIM)
    scale2 = 1.0 / jnp.sqrt(HIDDEN)
    return {
        "w1": jax.random.uniform(ks[0], (IN_DIM, HIDDEN), jnp.float32, -scale1, scale1),
        "b1": jax.random.uniform(ks[1], (1, HIDDEN), jnp.float32, -scale1, scale1),
        "g1": jnp.ones((1, HIDDEN), jnp.float32),
        "be1": jnp.zeros((1, HIDDEN), jnp.float32),
        "w2": jax.random.uniform(ks[2], (HIDDEN, HIDDEN), jnp.float32, -scale2, scale2),
        "b2": jax.random.uniform(ks[3], (1, HIDDEN), jnp.float32, -scale2, scale2),
        "g2": jnp.ones((1, HIDDEN), jnp.float32),
        "be2": jnp.zeros((1, HIDDEN), jnp.float32),
        "w3": jax.random.uniform(ks[4], (HIDDEN, IN_DIM), jnp.float32, -scale2, scale2),
        "b3": jax.random.uniform(ks[5], (1, IN_DIM), jnp.float32, -scale2, scale2),
    }


def _reference_forward(x, params, *, bf16_matmul=True):
    """Pure-JAX reference. bf16_matmul=True replicates the kernel's math
    (bf16 MXU inputs, f32 accumulate); False is straight fp32 eval semantics."""
    x2d = jnp.reshape(x, (-1, IN_DIM)).astype(jnp.float32)

    def mm(a, w):
        if bf16_matmul:
            return jnp.dot(a.astype(jnp.bfloat16), w.astype(jnp.bfloat16),
                           preferred_element_type=jnp.float32)
        return jnp.dot(a, w, preferred_element_type=jnp.float32,
                       precision=jax.lax.Precision.HIGHEST)

    h = mm(x2d, params["w1"]) + params["b1"]
    h = _layernorm(h, params["g1"], params["be1"])
    h = jnp.maximum(h, 0.0)
    h = mm(h, params["w2"]) + params["b2"]
    h = _layernorm(h, params["g2"], params["be2"])
    h = jnp.maximum(h, 0.0)
    return mm(h, params["w3"]) + params["b3"]


if __name__ == "__main__":
    key = jax.random.PRNGKey(0)
    kx, kp = jax.random.split(key)

    # Batch of 2 tic-tac-toe boards with values in {-1, 0, 1}.
    x = jax.random.randint(kx, (2, BOARD_SIZE, BOARD_SIZE), -1, 2).astype(jnp.float32)
    params = init_params(kp)
    packed = pack_params(params)

    out = tictactoe_net_forward(x, packed)
    out = jax.block_until_ready(out)
    assert out.shape == (2, IN_DIM)

    # Exact-math reference (same bf16 matmul inputs + f32 accumulate as kernel).
    ref_bf16 = _reference_forward(x, params, bf16_matmul=True)
    assert jnp.allclose(out, ref_bf16, atol=1e-3, rtol=1e-3), "mismatch vs kernel-math reference"

    # Loose sanity check vs full-fp32 PyTorch-eval semantics.
    ref_f32 = _reference_forward(x, params, bf16_matmul=False)
    assert jnp.allclose(out, ref_f32, atol=5e-2, rtol=5e-2), "mismatch vs fp32 reference"

    print("KERNEL_OK")
</pallas_src>

<mosaic_0001>
module attributes {stable_mosaic.version = 11 : i64} {
  func.func @tictactoe_kernel(%arg0: i32, %arg1: memref<16x9xbf16, #tpu.memory_space<vmem>>, %arg2: memref<9x128xbf16, #tpu.memory_space<vmem>>, %arg3: memref<128x128xbf16, #tpu.memory_space<vmem>>, %arg4: memref<128x9xbf16, #tpu.memory_space<vmem>>, %arg5: memref<8x128xf32, #tpu.memory_space<vmem>>, %arg6: memref<1x9xf32, #tpu.memory_space<vmem>>, %arg7: memref<16x9xf32, #tpu.memory_space<vmem>>) attributes {dimension_semantics = [#tpu.dimension_semantics<parallel>], iteration_bounds = array<i64: 1>, scalar_prefetch = 0 : i64, scratch_operands = 0 : i64, tpu.core_type = #tpu.core_type<tc>, window_params = [{transform_indices = @transform_0, window_bounds = array<i64: 16, 9>}, {pipeline_mode = #tpu.pipeline_mode<synchronous>, transform_indices = @transform_1, window_bounds = array<i64: 9, 128>}, {pipeline_mode = #tpu.pipeline_mode<synchronous>, transform_indices = @transform_2, window_bounds = array<i64: 128, 128>}, {pipeline_mode = #tpu.pipeline_mode<synchronous>, transform_indices = @transform_3, window_bounds = array<i64: 128, 9>}, {pipeline_mode = #tpu.pipeline_mode<synchronous>, transform_indices = @transform_4, window_bounds = array<i64: 8, 128>}, {pipeline_mode = #tpu.pipeline_mode<synchronous>, transform_indices = @transform_5, window_bounds = array<i64: 1, 9>}, {transform_indices = @transform_6, window_bounds = array<i64: 16, 9>}]} {
    %c0 = arith.constant 0 : index
    %c0_0 = arith.constant 0 : index
    %0 = vector.load %arg5[%c0, %c0_0] : memref<8x128xf32, #tpu.memory_space<vmem>>, vector<8x128xf32>
    %1 = vector.extract_strided_slice %0 {offsets = [0, 0], sizes = [1, 128], strides = [1, 1]} : vector<8x128xf32> to vector<1x128xf32>
    %2 = vector.extract_strided_slice %0 {offsets = [1, 0], sizes = [1, 128], strides = [1, 1]} : vector<8x128xf32> to vector<1x128xf32>
    %3 = vector.extract_strided_slice %0 {offsets = [2, 0], sizes = [1, 128], strides = [1, 1]} : vector<8x128xf32> to vector<1x128xf32>
    %4 = vector.extract_strided_slice %0 {offsets = [3, 0], sizes = [1, 128], strides = [1, 1]} : vector<8x128xf32> to vector<1x128xf32>
    %5 = vector.extract_strided_slice %0 {offsets = [4, 0], sizes = [1, 128], strides = [1, 1]} : vector<8x128xf32> to vector<1x128xf32>
    %6 = vector.extract_strided_slice %0 {offsets = [5, 0], sizes = [1, 128], strides = [1, 1]} : vector<8x128xf32> to vector<1x128xf32>
    %c0_1 = arith.constant 0 : index
    %c0_2 = arith.constant 0 : index
    %7 = vector.load %arg1[%c0_1, %c0_2] : memref<16x9xbf16, #tpu.memory_space<vmem>>, vector<16x9xbf16>
    %c0_3 = arith.constant 0 : index
    %c0_4 = arith.constant 0 : index
    %8 = vector.load %arg2[%c0_3, %c0_4] : memref<9x128xbf16, #tpu.memory_space<vmem>>, vector<9x128xbf16>
    %cst = arith.constant dense<0.000000e+00> : vector<16x128xf32>
    %9 = tpu.matmul %7, %8, %cst {dimension_numbers = #tpu.dot_dimension_numbers<[1], [0], [0], [1], [0, 0, 1, 1], [], []>} : vector<16x9xbf16>, vector<9x128xbf16>, vector<16x128xf32> -> vector<16x128xf32>
    %10 = vector.broadcast %1 : vector<1x128xf32> to vector<16x128xf32>
    %11 = arith.addf %9, %10 : vector<16x128xf32>
    %cst_5 = arith.constant dense<0.000000e+00> : vector<16xf32>
    %12 = vector.multi_reduction <add>, %11, %cst_5 [1] : vector<16x128xf32> to vector<16xf32>
    %13 = vector.shape_cast %12 : vector<16xf32> to vector<16x1xf32>
    %cst_6 = arith.constant 7.812500e-03 : f32
    %14 = vector.broadcast %cst_6 : f32 to vector<16x1xf32>
    %15 = arith.mulf %13, %14 : vector<16x1xf32>
    %16 = arith.mulf %11, %11 : vector<16x128xf32>
    %cst_7 = arith.constant dense<0.000000e+00> : vector<16xf32>
    %17 = vector.multi_reduction <add>, %16, %cst_7 [1] : vector<16x128xf32> to vector<16xf32>
    %18 = vector.shape_cast %17 : vector<16xf32> to vector<16x1xf32>
    %cst_8 = arith.constant 7.812500e-03 : f32
    %19 = vector.broadcast %cst_8 : f32 to vector<16x1xf32>
    %20 = arith.mulf %18, %19 : vector<16x1xf32>
    %21 = arith.mulf %15, %15 : vector<16x1xf32>
    %22 = arith.subf %20, %21 : vector<16x1xf32>
    %cst_9 = arith.constant 9.99999974E-6 : f32
    %23 = vector.broadcast %cst_9 : f32 to vector<16x1xf32>
    %24 = arith.addf %22, %23 : vector<16x1xf32>
    %25 = math.rsqrt %24 : vector<16x1xf32>
    %26 = vector.broadcast %15 : vector<16x1xf32> to vector<16x128xf32>
    %27 = arith.subf %11, %26 : vector<16x128xf32>
    %28 = vector.broadcast %25 : vector<16x1xf32> to vector<16x128xf32>
    %29 = arith.mulf %27, %28 : vector<16x128xf32>
    %30 = vector.broadcast %2 : vector<1x128xf32> to vector<16x128xf32>
    %31 = arith.mulf %29, %30 : vector<16x128xf32>
    %32 = vector.broadcast %3 : vector<1x128xf32> to vector<16x128xf32>
    %33 = arith.addf %31, %32 : vector<16x128xf32>
    %cst_10 = arith.constant 0.000000e+00 : f32
    %34 = vector.broadcast %cst_10 : f32 to vector<16x128xf32>
    %35 = arith.maximumf %33, %34 : vector<16x128xf32>
    %36 = arith.truncf %35 : vector<16x128xf32> to vector<16x128xbf16>
    %c0_11 = arith.constant 0 : index
    %c0_12 = arith.constant 0 : index
    %37 = vector.load %arg3[%c0_11, %c0_12] : memref<128x128xbf16, #tpu.memory_space<vmem>>, vector<128x128xbf16>
    %cst_13 = arith.constant dense<0.000000e+00> : vector<16x128xf32>
    %38 = tpu.matmul %36, %37, %cst_13 {dimension_numbers = #tpu.dot_dimension_numbers<[1], [0], [0], [1], [0, 0, 1, 1], [], []>} : vector<16x128xbf16>, vector<128x128xbf16>, vector<16x128xf32> -> vector<16x128xf32>
    %39 = vector.broadcast %4 : vector<1x128xf32> to vector<16x128xf32>
    %40 = arith.addf %38, %39 : vector<16x128xf32>
    %cst_14 = arith.constant dense<0.000000e+00> : vector<16xf32>
    %41 = vector.multi_reduction <add>, %40, %cst_14 [1] : vector<16x128xf32> to vector<16xf32>
    %42 = vector.shape_cast %41 : vector<16xf32> to vector<16x1xf32>
    %cst_15 = arith.constant 7.812500e-03 : f32
    %43 = vector.broadcast %cst_15 : f32 to vector<16x1xf32>
    %44 = arith.mulf %42, %43 : vector<16x1xf32>
    %45 = arith.mulf %40, %40 : vector<16x128xf32>
    %cst_16 = arith.constant dense<0.000000e+00> : vector<16xf32>
    %46 = vector.multi_reduction <add>, %45, %cst_16 [1] : vector<16x128xf32> to vector<16xf32>
    %47 = vector.shape_cast %46 : vector<16xf32> to vector<16x1xf32>
    %cst_17 = arith.constant 7.812500e-03 : f32
    %48 = vector.broadcast %cst_17 : f32 to vector<16x1xf32>
    %49 = arith.mulf %47, %48 : vector<16x1xf32>
    %50 = arith.mulf %44, %44 : vector<16x1xf32>
    %51 = arith.subf %49, %50 : vector<16x1xf32>
    %cst_18 = arith.constant 9.99999974E-6 : f32
    %52 = vector.broadcast %cst_18 : f32 to vector<16x1xf32>
    %53 = arith.addf %51, %52 : vector<16x1xf32>
    %54 = math.rsqrt %53 : vector<16x1xf32>
    %55 = vector.broadcast %44 : vector<16x1xf32> to vector<16x128xf32>
    %56 = arith.subf %40, %55 : vector<16x128xf32>
    %57 = vector.broadcast %54 : vector<16x1xf32> to vector<16x128xf32>
    %58 = arith.mulf %56, %57 : vector<16x128xf32>
    %59 = vector.broadcast %5 : vector<1x128xf32> to vector<16x128xf32>
    %60 = arith.mulf %58, %59 : vector<16x128xf32>
    %61 = vector.broadcast %6 : vector<1x128xf32> to vector<16x128xf32>
    %62 = arith.addf %60, %61 : vector<16x128xf32>
    %cst_19 = arith.constant 0.000000e+00 : f32
    %63 = vector.broadcast %cst_19 : f32 to vector<16x128xf32>
    %64 = arith.maximumf %62, %63 : vector<16x128xf32>
    %65 = arith.truncf %64 : vector<16x128xf32> to vector<16x128xbf16>
    %c0_20 = arith.constant 0 : index
    %c0_21 = arith.constant 0 : index
    %66 = vector.load %arg4[%c0_20, %c0_21] : memref<128x9xbf16, #tpu.memory_space<vmem>>, vector<128x9xbf16>
    %cst_22 = arith.constant dense<0.000000e+00> : vector<16x9xf32>
    %67 = tpu.matmul %65, %66, %cst_22 {dimension_numbers = #tpu.dot_dimension_numbers<[1], [0], [0], [1], [0, 0, 1, 1], [], []>} : vector<16x128xbf16>, vector<128x9xbf16>, vector<16x9xf32> -> vector<16x9xf32>
    %c0_23 = arith.constant 0 : index
    %c0_24 = arith.constant 0 : index
    %68 = vector.load %arg6[%c0_23, %c0_24] : memref<1x9xf32, #tpu.memory_space<vmem>>, vector<1x9xf32>
    %69 = vector.broadcast %68 : vector<1x9xf32> to vector<16x9xf32>
    %70 = arith.addf %67, %69 : vector<16x9xf32>
    %c0_25 = arith.constant 0 : index
    %c0_26 = arith.constant 0 : index
    %71 = vector.load %arg7[%c0_25, %c0_26] : memref<16x9xf32, #tpu.memory_space<vmem>>, vector<16x9xf32>
    tpu.vector_store %arg7[%c0_25, %c0_26], %70 {strides = array<i32>} : memref<16x9xf32, #tpu.memory_space<vmem>>, vector<16x9xf32>,
    return
  }
  func.func @transform_0(%arg0: i32) -> (i32, i32) {
    %c0_i32 = arith.constant 0 : i32
    %c0_i32_0 = arith.constant 0 : i32
    return %arg0, %c0_i32 : i32, i32
  }
  func.func @transform_1(%arg0: i32) -> (i32, i32) {
    %c0_i32 = arith.constant 0 : i32
    %c0_i32_0 = arith.constant 0 : i32
    %c0_i32_1 = arith.constant 0 : i32
    return %c0_i32, %c0_i32_0 : i32, i32
  }
  func.func @transform_2(%arg0: i32) -> (i32, i32) {
    %c0_i32 = arith.constant 0 : i32
    %c0_i32_0 = arith.constant 0 : i32
    %c0_i32_1 = arith.constant 0 : i32
    return %c0_i32, %c0_i32_0 : i32, i32
  }
  func.func @transform_3(%arg0: i32) -> (i32, i32) {
    %c0_i32 = arith.constant 0 : i32
    %c0_i32_0 = arith.constant 0 : i32
    %c0_i32_1 = arith.constant 0 : i32
    return %c0_i32, %c0_i32_0 : i32, i32
  }
  func.func @transform_4(%arg0: i32) -> (i32, i32) {
    %c0_i32 = arith.constant 0 : i32
    %c0_i32_0 = arith.constant 0 : i32
    %c0_i32_1 = arith.constant 0 : i32
    return %c0_i32, %c0_i32_0 : i32, i32
  }
  func.func @transform_5(%arg0: i32) -> (i32, i32) {
    %c0_i32 = arith.constant 0 : i32
    %c0_i32_0 = arith.constant 0 : i32
    %c0_i32_1 = arith.constant 0 : i32
    return %c0_i32, %c0_i32_0 : i32, i32
  }
  func.func @transform_6(%arg0: i32) -> (i32, i32) {
    %c0_i32 = arith.constant 0 : i32
    %c0_i32_0 = arith.constant 0 : i32
    return %arg0, %c0_i32 : i32, i32
  }
}

</mosaic_0001>

<llo_original>
// kernel: tictactoe_net_forward.1
$region0: #{tictactoe_net_forward.1}
  #allocation0 [shape = 'u32[]', space=smem, size = 0x4, offset = 0x4, fixed_abs, tag = 'smem constant byte address 0x4 - core index']
  #allocation1 [shape = 'u32[144,128]{1,0:T(1,128)}', space=vmem, size = 0x12000, scoped, tag = 'internal scratch']
  %s0 = inlined_call_operand.vmem [shape: bf16[16,9], index: 0, kind: input, shape index: {}]
  %s1 = inlined_call_operand.vmem [shape: bf16[9,128], index: 1, kind: input, shape index: {}]
  %s2 = inlined_call_operand.vmem [shape: bf16[128,128], index: 2, kind: input, shape index: {}]
  %s3 = inlined_call_operand.vmem [shape: bf16[128,9], index: 3, kind: input, shape index: {}]
  %s4 = inlined_call_operand.vmem [shape: f32[8,128], index: 4, kind: input, shape index: {}]
  %s5 = inlined_call_operand.vmem [shape: f32[1,9], index: 5, kind: input, shape index: {}]
  %s6 = inlined_call_operand.vmem [shape: f32[16,9], index: 6, kind: output, shape index: {}]
  %s7 = sld [smem:[#allocation0]]
  $region34: #{tictactoe_net_forward.1} parent=0
    _
  %s9 = ssub.s32 1, %s7
  %s10 = scalar_select 0, %s9, %s7
  // Predicated region
  $region2: #{tictactoe_net_forward.1} parent=0 // pred_check
    _
  $region3: #{tictactoe_net_forward.1} parent=0 // pred_check_branch
    %12 = sbr.rel (0) target = $region5
  $region4: #{tictactoe_net_forward.1} parent=0 // pred_region
    _
  $region5: #{tictactoe_net_forward.1} parent=0 // pred_fallthru
    _
  // Predicated region
  $region6: #{tictactoe_net_forward.1} parent=0 // pred_check
    _
  $region7: #{tictactoe_net_forward.1} parent=0 // pred_check_branch
    %14 = sbr.rel (0) target = $region9
  $region8: #{tictactoe_net_forward.1} parent=0 // pred_region
    _
  $region9: #{tictactoe_net_forward.1} parent=0 // pred_fallthru
    _
  // Predicated region
  $region10: #{tictactoe_net_forward.1} parent=0 // pred_check
    _
  $region11: #{tictactoe_net_forward.1} parent=0 // pred_check_branch
    %16 = sbr.rel (0) target = $region13
  $region12: #{tictactoe_net_forward.1} parent=0 // pred_region
    _
  $region13: #{tictactoe_net_forward.1} parent=0 // pred_fallthru
    _
  // Predicated region
  $region14: #{tictactoe_net_forward.1} parent=0 // pred_check
    _
  $region15: #{tictactoe_net_forward.1} parent=0 // pred_check_branch
    %18 = sbr.rel (0) target = $region17
  $region16: #{tictactoe_net_forward.1} parent=0 // pred_region
    _
  $region17: #{tictactoe_net_forward.1} parent=0 // pred_fallthru
    _
  // Predicated region
  $region18: #{tictactoe_net_forward.1} parent=0 // pred_check
    _
  $region19: #{tictactoe_net_forward.1} parent=0 // pred_check_branch
    %20 = sbr.rel (0) target = $region21
  $region20: #{tictactoe_net_forward.1} parent=0 // pred_region
    _
  $region21: #{tictactoe_net_forward.1} parent=0 // pred_fallthru
    _
  // Predicated region
  $region22: #{tictactoe_net_forward.1} parent=0 // pred_check
    _
  $region23: #{tictactoe_net_forward.1} parent=0 // pred_check_branch
    %22 = sbr.rel (0) target = $region25
  $region24: #{tictactoe_net_forward.1} parent=0 // pred_region
    _
  $region25: #{tictactoe_net_forward.1} parent=0 // pred_fallthru
    _
  %v24 = vld [vmem:[%s4] sm:$0xff]
  %v25 = vld [vmem:[%s0] sm:$0xf]
  %v26 = vld [vmem:[%s0 + $0x4] sm:$0xf]
  %v27 = vld [vmem:[%s1] sm:$0xf]
  %v28 = vld [vmem:[%s1 + $0x4] sm:$0x1]
  %v29 = vlaneseq
  %v30 = vshrl.u32 %v29, 7
  %v31 = vsub.s32 0, %v30
  %v32 = vrot.slane %v24, %v31
  %v35 = vunpack.c.l.b16 %v25
  %v36 = vunpack.c.l.b16 %v26
  %v37 = vpack.c.b16 %v36, %v35
  %v40 = vunpack.c.l.b16 %v27
  %v41 = vunpack.c.l.b16 %v28
  %v42 = vpack.c.b16 %v41, %v40
  %vm43 = vcmask 72704
  %v45 = vsel %vm43, %v37, 0
  %vm47 = vcmask 1043456
  %vm48 = vcmask 1044480
  %v49 = vsel %vm47, 4294967295, 65535
  %v50 = vsel %vm48, %v49, 0
  %v52 = vand.u32 %v42, %v50
  %54 = vmatprep.subr.bf16.mxu0 0
  %55 = vmatpush1.bf16.msra.mxu0 0
  %56 = vmatprep.subr.bf16.mxu0 0
  %57 = vmatpush1.bf16.msra.mxu0 0
  %58 = vmatprep.subr.bf16.mxu0 0
  %59 = vmatpush1.bf16.msra.mxu0 0
  %60 = vmatprep.subr.bf16.mxu0 0
  %61 = vmatpush1.bf16.msra.mxu0 0
  %62 = vmatprep.subr.bf16.mxu0 0
  %63 = vmatpush1.bf16.msra.mxu0 0
  %64 = vmatprep.subr.bf16.mxu0 0
  %65 = vmatpush1.bf16.msra.mxu0 0
  %66 = vmatprep.subr.bf16.mxu0 0
  %67 = vmatpush1.bf16.msra.mxu0 0
  %68 = vmatprep.subr.bf16.mxu0 0
  %69 = vmatpush1.bf16.msra.mxu0 %v52
  %70 = vmatprep.subr.bf16.mxu0 0
  %71 = vmatpush2.bf16.msra.mxu0 0
  %72 = vmatprep.subr.bf16.mxu0 0
  %73 = vmatpush2.bf16.msra.mxu0 0
  %74 = vmatprep.subr.bf16.mxu0 0
  %75 = vmatpush2.bf16.msra.mxu0 0
  %76 = vmatprep.subr.bf16.mxu0 0
  %77 = vmatpush2.bf16.msra.mxu0 0
  %78 = vmatprep.subr.bf16.mxu0 0
  %79 = vmatpush2.bf16.msra.mxu0 0
  %80 = vmatprep.subr.bf16.mxu0 0
  %81 = vmatpush2.bf16.msra.mxu0 0
  %82 = vmatprep.subr.bf16.mxu0 0
  %83 = vmatpush2.bf16.msra.mxu0 0
  %84 = vmatprep.subr.bf16.mxu0 0
  %85 = vmatpush2.bf16.msra.mxu0 0
  %86 = vmatprep.mubr.bf16.mxu0 0
  %87 = vmatmul.mubr.bf16.gmra.mxu0 %v45
  %v88 = vpop.f32.mrf.mxu0
  %v89 = vadd.f32 %v32, %v88
  %v90 = vpop.f32.mrf.mxu0
  %v91 = vpop.f32.mrf.mxu0
  %v92 = vadd.f32 %v32, %v91
  %v93 = vpop.f32.mrf.mxu0
  %94 = vdwg.mxu0
  %95 = vadd.xlane.f32.xlu0 %v89
  %v96 = vpop.xlane.xlu0 %95
  %97 = vadd.xlane.f32.xlu0 %v92
  %v98 = vpop.xlane.xlu0 %97
  %v99 = vmul.f32 %v96, 0.0078125
  %v100 = vmul.f32 %v98, 0.0078125
  %v101 = vmul.f32 %v89, %v89
  %v102 = vmul.f32 %v92, %v92
  %103 = vadd.xlane.f32.xlu0 %v101
  %v104 = vpop.xlane.xlu0 %103
  %105 = vadd.xlane.f32.xlu0 %v102
  %v106 = vpop.xlane.xlu0 %105
  %v107 = vmul.f32 %v104, 0.0078125
  %v108 = vmul.f32 %v106, 0.0078125
  %v109 = vmul.f32 %v99, %v99
  %v110 = vmul.f32 %v100, %v100
  %v111 = vsub.f32 %v107, %v109
  %v112 = vsub.f32 %v108, %v110
  %v113 = vadd.f32 %v111, 1e-05
  %v114 = vadd.f32 %v112, 1e-05
  %v115 = vrsqrt.pop %v113
  %v116 = vrsqrt.pop %v114
  %v117 = vsub.f32 %v89, %v99
  %v118 = vsub.f32 %v92, %v100
  %v119 = vmul.f32 %v117, %v115
  %v120 = vmul.f32 %v118, %v116
  %v121 = vlaneseq
  %v122 = vshrl.u32 %v121, 7
  %v123 = vsub.s32 1, %v122
  %v124 = vrot.slane %v24, %v123
  %v125 = vmul.f32 %v119, %v124
  %v126 = vmul.f32 %v120, %v124
  %v127 = vlaneseq
  %v128 = vshrl.u32 %v127, 7
  %v129 = vsub.s32 2, %v128
  %v130 = vrot.slane %v24, %v129
  %v131 = vadd.f32 %v125, %v130
  %v132 = vadd.f32 %v126, %v130
  %v133 = vmax.f32 %v131, 0.0
  %v134 = vmax.f32 %v132, 0.0
  %v135 = vpack.c.bf16 %v134, %v133
  %v136 = vld [vmem:[%s2] sm:$0xf]
  %v137 = vld [vmem:[%s2 + $0x4] sm:$0xf]
  %v138 = vld [vmem:[%s2 + $0x8] sm:$0xf]
  %v139 = vld [vmem:[%s2 + $0xc] sm:$0xf]
  %v140 = vld [vmem:[%s2 + $0x10] sm:$0xf]
  %v141 = vld [vmem:[%s2 + $0x14] sm:$0xf]
  %v142 = vld [vmem:[%s2 + $0x18] sm:$0xf]
  %v143 = vld [vmem:[%s2 + $0x1c] sm:$0xf]
  %v144 = vld [vmem:[%s2 + $0x20] sm:$0xf]
  %v145 = vld [vmem:[%s2 + $0x24] sm:$0xf]
  %v146 = vld [vmem:[%s2 + $0x28] sm:$0xf]
  %v147 = vld [vmem:[%s2 + $0x2c] sm:$0xf]
  %v148 = vld [vmem:[%s2 + $0x30] sm:$0xf]
  %v149 = vld [vmem:[%s2 + $0x34] sm:$0xf]
  %v150 = vld [vmem:[%s2 + $0x38] sm:$0xf]
  %v151 = vld [vmem:[%s2 + $0x3c] sm:$0xf]
  %v152 = vlaneseq
  %v153 = vshrl.u32 %v152, 7
  %v154 = vsub.s32 3, %v153
  %v155 = vrot.slane %v24, %v154
  %v172 = vunpack.c.l.b16 %v136
  %v173 = vunpack.c.l.b16 %v137
  %v174 = vunpack.c.l.b16 %v138
  %v175 = vunpack.c.l.b16 %v139
  %v176 = vunpack.c.l.b16 %v140
  %v177 = vunpack.c.l.b16 %v141
  %v178 = vunpack.c.l.b16 %v142
  %v179 = vunpack.c.l.b16 %v143
  %v180 = vunpack.c.l.b16 %v144
  %v181 = vunpack.c.l.b16 %v145
  %v182 = vunpack.c.l.b16 %v146
  %v183 = vunpack.c.l.b16 %v147
  %v184 = vunpack.c.l.b16 %v148
  %v185 = vunpack.c.l.b16 %v149
  %v186 = vunpack.c.l.b16 %v150
  %v187 = vunpack.c.l.b16 %v151
  %v188 = vpack.c.b16 %v173, %v172
  %v189 = vpack.c.b16 %v175, %v174
  %v190 = vpack.c.b16 %v177, %v176
  %v191 = vpack.c.b16 %v179, %v178
  %v192 = vpack.c.b16 %v181, %v180
  %v193 = vpack.c.b16 %v183, %v182
  %v194 = vpack.c.b16 %v185, %v184
  %v195 = vpack.c.b16 %v187, %v186
  %204 = vmatprep.subr.bf16.mxu0 0
  %205 = vmatpush1.bf16.msra.mxu0 %v195
  %206 = vmatprep.subr.bf16.mxu0 0
  %207 = vmatpush1.bf16.msra.mxu0 %v194
  %208 = vmatprep.subr.bf16.mxu0 0
  %209 = vmatpush1.bf16.msra.mxu0 %v193
  %210 = vmatprep.subr.bf16.mxu0 0
  %211 = vmatpush1.bf16.msra.mxu0 %v192
  %212 = vmatprep.subr.bf16.mxu0 0
  %213 = vmatpush1.bf16.msra.mxu0 %v191
  %214 = vmatprep.subr.bf16.mxu0 0
  %215 = vmatpush1.bf16.msra.mxu0 %v190
  %216 = vmatprep.subr.bf16.mxu0 0
  %217 = vmatpush1.bf16.msra.mxu0 %v189
  %218 = vmatprep.subr.bf16.mxu0 0
  %219 = vmatpush1.bf16.msra.mxu0 %v188
  %220 = vmatprep.subr.bf16.mxu0 0
  %221 = vmatpush2.bf16.msra.mxu0 0
  %222 = vmatprep.subr.bf16.mxu0 0
  %223 = vmatpush2.bf16.msra.mxu0 0
  %224 = vmatprep.subr.bf16.mxu0 0
  %225 = vmatpush2.bf16.msra.mxu0 0
  %226 = vmatprep.subr.bf16.mxu0 0
  %227 = vmatpush2.bf16.msra.mxu0 0
  %228 = vmatprep.subr.bf16.mxu0 0
  %229 = vmatpush2.bf16.msra.mxu0 0
  %230 = vmatprep.subr.bf16.mxu0 0
  %231 = vmatpush2.bf16.msra.mxu0 0
  %232 = vmatprep.subr.bf16.mxu0 0
  %233 = vmatpush2.bf16.msra.mxu0 0
  %234 = vmatprep.subr.bf16.mxu0 0
  %235 = vmatpush2.bf16.msra.mxu0 0
  %236 = vmatprep.mubr.bf16.mxu0 0
  %237 = vmatmul.mubr.bf16.gmra.mxu0 %v135
  %v238 = vpop.f32.mrf.mxu0
  %v239 = vadd.f32 %v155, %v238
  %v240 = vpop.f32.mrf.mxu0
  %v241 = vpop.f32.mrf.mxu0
  %v242 = vadd.f32 %v155, %v241
  %v243 = vpop.f32.mrf.mxu0
  %244 = vdwg.mxu0
  %245 = vadd.xlane.f32.xlu0 %v239
  %v246 = vpop.xlane.xlu0 %245
  %247 = vadd.xlane.f32.xlu0 %v242
  %v248 = vpop.xlane.xlu0 %247
  %v249 = vmul.f32 %v246, 0.0078125
  %v250 = vmul.f32 %v248, 0.0078125
  %v251 = vmul.f32 %v239, %v239
  %v252 = vmul.f32 %v242, %v242
  %253 = vadd.xlane.f32.xlu0 %v251
  %v254 = vpop.xlane.xlu0 %253
  %255 = vadd.xlane.f32.xlu0 %v252
  %v256 = vpop.xlane.xlu0 %255
  %v257 = vmul.f32 %v254, 0.0078125
  %v258 = vmul.f32 %v256, 0.0078125
  %v259 = vmul.f32 %v249, %v249
  %v260 = vmul.f32 %v250, %v250
  %v261 = vsub.f32 %v257, %v259
  %v262 = vsub.f32 %v258, %v260
  %v263 = vadd.f32 %v261, 1e-05
  %v264 = vadd.f32 %v262, 1e-05
  %v265 = vrsqrt.pop %v263
  %v266 = vrsqrt.pop %v264
  %v267 = vsub.f32 %v239, %v249
  %v268 = vsub.f32 %v242, %v250
  %v269 = vmul.f32 %v267, %v265
  %v270 = vmul.f32 %v268, %v266
  %v271 = vlaneseq
  %v272 = vshrl.u32 %v271, 7
  %v273 = vsub.s32 4, %v272
  %v274 = vrot.slane %v24, %v273
  %v275 = vmul.f32 %v269, %v274
  %v276 = vmul.f32 %v270, %v274
  %v277 = vlaneseq
  %v278 = vshrl.u32 %v277, 7
  %v279 = vsub.s32 5, %v278
  %v280 = vrot.slane %v24, %v279
  %v281 = vadd.f32 %v275, %v280
  %v282 = vadd.f32 %v276, %v280
  %v283 = vmax.f32 %v281, 0.0
  %v284 = vmax.f32 %v282, 0.0
  %v285 = vpack.c.bf16 %v284, %v283
  %v286 = vld [vmem:[%s3] sm:$0xf]
  %v287 = vld [vmem:[%s3 + $0x4] sm:$0xf]
  %v288 = vld [vmem:[%s3 + $0x8] sm:$0xf]
  %v289 = vld [vmem:[%s3 + $0xc] sm:$0xf]
  %v290 = vld [vmem:[%s3 + $0x10] sm:$0xf]
  %v291 = vld [vmem:[%s3 + $0x14] sm:$0xf]
  %v292 = vld [vmem:[%s3 + $0x18] sm:$0xf]
  %v293 = vld [vmem:[%s3 + $0x1c] sm:$0xf]
  %v294 = vld [vmem:[%s3 + $0x20] sm:$0xf]
  %v295 = vld [vmem:[%s3 + $0x24] sm:$0xf]
  %v296 = vld [vmem:[%s3 + $0x28] sm:$0xf]
  %v297 = vld [vmem:[%s3 + $0x2c] sm:$0xf]
  %v298 = vld [vmem:[%s3 + $0x30] sm:$0xf]
  %v299 = vld [vmem:[%s3 + $0x34] sm:$0xf]
  %v300 = vld [vmem:[%s3 + $0x38] sm:$0xf]
  %v301 = vld [vmem:[%s3 + $0x3c] sm:$0xf]
  %v302 = vld [vmem:[%s5] sm:$0x1]
  %v304 = vlaneseq
  %v305 = vshrl.u32 %v304, 7
  %v306 = vsub.s32 0, %v305
  %v307 = vrot.slane %v302, %v306
  %v325 = vunpack.c.l.b16 %v286
  %v326 = vunpack.c.l.b16 %v287
  %v327 = vunpack.c.l.b16 %v288
  %v328 = vunpack.c.l.b16 %v289
  %v329 = vunpack.c.l.b16 %v290
  %v330 = vunpack.c.l.b16 %v291
  %v331 = vunpack.c.l.b16 %v292
  %v332 = vunpack.c.l.b16 %v293
  %v333 = vunpack.c.l.b16 %v294
  %v334 = vunpack.c.l.b16 %v295
  %v335 = vunpack.c.l.b16 %v296
  %v336 = vunpack.c.l.b16 %v297
  %v337 = vunpack.c.l.b16 %v298
  %v338 = vunpack.c.l.b16 %v299
  %v339 = vunpack.c.l.b16 %v300
  %v340 = vunpack.c.l.b16 %v301
  %v341 = vpack.c.b16 %v326, %v325
  %v342 = vpack.c.b16 %v328, %v327
  %v343 = vpack.c.b16 %v330, %v329
  %v344 = vpack.c.b16 %v332, %v331
  %v345 = vpack.c.b16 %v334, %v333
  %v346 = vpack.c.b16 %v336, %v335
  %v347 = vpack.c.b16 %v338, %v337
  %v348 = vpack.c.b16 %v340, %v339
  %357 = vmatprep.subr.bf16.mxu0 0
  %358 = vmatpush1.bf16.msra.mxu0 %v348
  %359 = vmatprep.subr.bf16.mxu0 0
  %360 = vmatpush1.bf16.msra.mxu0 %v347
  %361 = vmatprep.subr.bf16.mxu0 0
  %362 = vmatpush1.bf16.msra.mxu0 %v346
  %363 = vmatprep.subr.bf16.mxu0 0
  %364 = vmatpush1.bf16.msra.mxu0 %v345
  %365 = vmatprep.subr.bf16.mxu0 0
  %366 = vmatpush1.bf16.msra.mxu0 %v344
  %367 = vmatprep.subr.bf16.mxu0 0
  %368 = vmatpush1.bf16.msra.mxu0 %v343
  %369 = vmatprep.subr.bf16.mxu0 0
  %370 = vmatpush1.bf16.msra.mxu0 %v342
  %371 = vmatprep.subr.bf16.mxu0 0
  %372 = vmatpush1.bf16.msra.mxu0 %v341
  %373 = vmatprep.subr.bf16.mxu0 0
  %374 = vmatpush2.bf16.msra.mxu0 0
  %375 = vmatprep.subr.bf16.mxu0 0
  %376 = vmatpush2.bf16.msra.mxu0 0
  %377 = vmatprep.subr.bf16.mxu0 0
  %378 = vmatpush2.bf16.msra.mxu0 0
  %379 = vmatprep.subr.bf16.mxu0 0
  %380 = vmatpush2.bf16.msra.mxu0 0
  %381 = vmatprep.subr.bf16.mxu0 0
  %382 = vmatpush2.bf16.msra.mxu0 0
  %383 = vmatprep.subr.bf16.mxu0 0
  %384 = vmatpush2.bf16.msra.mxu0 0
  %385 = vmatprep.subr.bf16.mxu0 0
  %386 = vmatpush2.bf16.msra.mxu0 0
  %387 = vmatprep.subr.bf16.mxu0 0
  %388 = vmatpush2.bf16.msra.mxu0 0
  %389 = vmatprep.mubr.bf16.mxu0 0
  %390 = vmatmul.mubr.bf16.gmra.mxu0 %v285
  %v391 = vpop.f32.mrf.mxu0
  %v392 = vadd.f32 %v307, %v391
  %v393 = vpop.f32.mrf.mxu0
  %v394 = vpop.f32.mrf.mxu0
  %v395 = vadd.f32 %v307, %v394
  %v396 = vpop.f32.mrf.mxu0
  %397 = vdwg.mxu0
  %398 = vst.msk [vmem:[%s6] sm:$0xff] %vm43, %v392
  %399 = vst.msk [vmem:[%s6 + $0x8] sm:$0xff] %vm43, %v395
  // Predicated region
  $region26: #{tictactoe_net_forward.1} parent=0 // pred_check
    _
  $region27: #{tictactoe_net_forward.1} parent=0 // pred_check_branch
    %401 = sbr.rel (0) target = $region29
  $region28: #{tictactoe_net_forward.1} parent=0 // pred_region
    _
  $region29: #{tictactoe_net_forward.1} parent=0 // pred_fallthru
    _
  // Predicated region
  $region30: #{tictactoe_net_forward.1} parent=0 // pred_check
    _
  $region31: #{tictactoe_net_forward.1} parent=0 // pred_check_branch
    %403 = sbr.rel (0) target = $region33
  $region32: #{tictactoe_net_forward.1} parent=0 // pred_region
    _
  $region33: #{tictactoe_net_forward.1} parent=0 // pred_fallthru
    _

</llo_original>
